<compile_context>
chip_gen: v7x
topology: tpu7x:2x2x1
jax: 0.10.0
libtpu: 0.0.40
codegen_flags: <defaults>
</compile_context>

<pallas_src>
import jax
import jax.numpy as jnp
import numpy as np
from jax.experimental import pallas as pl
from jax.experimental.pallas import tpu as pltpu

INPUT_SIZE = 640
LATENT_LENGTH = 30
LATENT_PADDED = 32    # pad K of the first matmul (free, layout-friendly)
HIDDEN1 = 128
HIDDEN2 = 128
HIDDEN3 = 64
HIDDEN4 = 64
HIDDEN_PADDED = 128   # hidden3/hidden4 zero-padded 64 -> 128 (lane-dense)

_FLOPS_PER_ROW = 2 * (LATENT_PADDED * HIDDEN_PADDED
                      + 3 * HIDDEN_PADDED * HIDDEN_PADDED
                      + HIDDEN1 * INPUT_SIZE)


def decoder_kernel(x_ref,
                   w4_ref, b4_ref,
                   w3_ref, b3_ref,
                   w2_ref, b2_ref,
                   w1_ref, b1_ref,
                   wo_ref, bo_ref,
                   out_ref):
    # bf16 MXU operands, f32 accumulation, f32 bias-add / ReLU, cast on store.
    x = x_ref[...].astype(jnp.bfloat16)

    h = jnp.dot(x, w4_ref[...], preferred_element_type=jnp.float32)
    h = jnp.maximum(h + b4_ref[...], 0.0)

    h = jnp.dot(h.astype(jnp.bfloat16), w3_ref[...],
                preferred_element_type=jnp.float32)
    h = jnp.maximum(h + b3_ref[...], 0.0)

    h = jnp.dot(h.astype(jnp.bfloat16), w2_ref[...],
                preferred_element_type=jnp.float32)
    h = jnp.maximum(h + b2_ref[...], 0.0)

    h = jnp.dot(h.astype(jnp.bfloat16), w1_ref[...],
                preferred_element_type=jnp.float32)
    h = jnp.maximum(h + b1_ref[...], 0.0)

    out = jnp.dot(h.astype(jnp.bfloat16), wo_ref[...],
                  preferred_element_type=jnp.float32)
    out_ref[...] = (out + bo_ref[...]).astype(out_ref.dtype)


def _round_up(x, m):
    return (x + m - 1) // m * m


def decoder_forward(latent, params, *, block_m=1024, out_dtype=jnp.bfloat16):
    """latent: (batch, 30) f32.  Returns (batch, 640) in `out_dtype`."""
    (w4, b4, w3, b3, w2, b2, w1, b1, wo, bo) = params
    batch = latent.shape[0]

    # Pad latent features 30 -> 32 (w4 has matching zero rows).
    latent = jnp.pad(latent, ((0, 0), (0, LATENT_PADDED - LATENT_LENGTH)))

    # Grid-step count: cover the batch with <= block_m row tiles; force an
    # even, >=2-step grid whenever batch >= 16 so the "parallel" batch axis
    # splits evenly across both v7x TensorCores (a ~0.35us extra grid step is
    # noise on single-TC v5e/v6e).
    n_steps = max(1, pl.cdiv(batch, block_m))
    if batch >= 16:
        n_steps = max(n_steps, 2)
        if n_steps % 2:
            n_steps += 1
    tm = max(8, _round_up(pl.cdiv(batch, n_steps), 8))
    grid = (pl.cdiv(batch, tm),)
    # No batch padding and no post-kernel slice: the ragged last block gets
    # bounded DMAs — out-of-range rows are computed on garbage but never
    # stored, and rows are independent, so valid output rows are exact.

    out_itemsize = np.dtype(out_dtype).itemsize
    weight_bytes = sum(int(w.size) * w.dtype.itemsize
                       for w in (w4, w3, w2, w1, wo))
    bias_bytes = sum(int(b.size) * b.dtype.itemsize
                     for b in (b4, b3, b2, b1, bo))
    cost = pl.CostEstimate(
        flops=_FLOPS_PER_ROW * batch,
        transcendentals=0,
        bytes_accessed=(weight_bytes + bias_bytes
                        + 4 * batch * LATENT_PADDED
                        + out_itemsize * batch * INPUT_SIZE),
    )

    # Explicit scoped-VMEM budget: double-buffered activation tiles plus the
    # (default double-buffered) resident weights/biases, with 2x slack.
    # Clamped to [16 MiB, 48 MiB] which is valid on v5e / v6e / v7x.
    vmem_needed = (2 * tm * LATENT_PADDED * 4
                   + 2 * tm * INPUT_SIZE * out_itemsize
                   + 2 * (weight_bytes + bias_bytes))
    vmem_limit = int(min(48 << 20, max(16 << 20, 2 * vmem_needed)))

    def resident(shape):
        # Constant block index -> DMA'd once, stays VMEM-resident across every
        # grid step while (tm, *) activation tiles stream.
        return pl.BlockSpec(shape, lambda i: (0, 0))

    out = pl.pallas_call(
        decoder_kernel,
        out_shape=jax.ShapeDtypeStruct((batch, INPUT_SIZE), out_dtype),
        grid=grid,
        in_specs=[
            pl.BlockSpec((tm, LATENT_PADDED), lambda i: (i, 0)),
            resident(w4.shape), resident(b4.shape),
            resident(w3.shape), resident(b3.shape),
            resident(w2.shape), resident(b2.shape),
            resident(w1.shape), resident(b1.shape),
            resident(wo.shape), resident(bo.shape),
        ],
        out_specs=pl.BlockSpec((tm, INPUT_SIZE), lambda i: (i, 0)),
        compiler_params=pltpu.CompilerParams(
            dimension_semantics=("parallel",),
            vmem_limit_bytes=vmem_limit),
        cost_estimate=cost,
    )(latent, w4, b4, w3, b3, w2, b2, w1, b1, wo, bo)
    return out


def init_linear_params(key, in_features, out_features, *,
                       pad_in_to=None, pad_out_to=None):
    """nn.Linear-style init U(-1/sqrt(in), 1/sqrt(in)).

    Weight stored (in_features, out_features) — transposed vs PyTorch — and
    cast to bf16 for streaming; bias kept f32 with shape (1, out) for
    broadcasting.  Optional zero-padding of the in/out dims keeps numerics
    exact (padded rows/cols contribute exactly zero, and relu(0) == 0).
    """
    kw, kb = jax.random.split(key)
    bound = 1.0 / np.sqrt(in_features)
    w = jax.random.uniform(kw, (in_features, out_features),
                           minval=-bound, maxval=bound, dtype=jnp.float32)
    b = jax.random.uniform(kb, (1, out_features),
                           minval=-bound, maxval=bound, dtype=jnp.float32)
    pad_in = (pad_in_to or in_features) - in_features
    pad_out = (pad_out_to or out_features) - out_features
    if pad_in or pad_out:
        w = jnp.pad(w, ((0, pad_in), (0, pad_out)))
        b = jnp.pad(b, ((0, 0), (0, pad_out)))
    return w.astype(jnp.bfloat16), b


def make_params(key):
    keys = jax.random.split(key, 5)
    w4, b4 = init_linear_params(keys[0], LATENT_LENGTH, HIDDEN4,
                                pad_in_to=LATENT_PADDED,
                                pad_out_to=HIDDEN_PADDED)
    w3, b3 = init_linear_params(keys[1], HIDDEN4, HIDDEN3,
                                pad_in_to=HIDDEN_PADDED,
                                pad_out_to=HIDDEN_PADDED)
    w2, b2 = init_linear_params(keys[2], HIDDEN3, HIDDEN2,
                                pad_in_to=HIDDEN_PADDED)
    w1, b1 = init_linear_params(keys[3], HIDDEN2, HIDDEN1)
    wo, bo = init_linear_params(keys[4], HIDDEN1, INPUT_SIZE)
    return (w4, b4, w3, b3, w2, b2, w1, b1, wo, bo)


def decoder_reference(latent, params):
    """Pure-JAX reference with identical bf16-operand / f32-accum numerics."""
    (w4, b4, w3, b3, w2, b2, w1, b1, wo, bo) = params
    x = jnp.pad(latent, ((0, 0), (0, LATENT_PADDED - LATENT_LENGTH)))

    def layer(x, w, b, relu):
        y = jnp.dot(x.astype(jnp.bfloat16), w,
                    preferred_element_type=jnp.float32) + b
        return jnp.maximum(y, 0.0) if relu else y

    h = layer(x, w4, b4, True)
    h = layer(h, w3, b3, True)
    h = layer(h, w2, b2, True)
    h = layer(h, w1, b1, True)
    return layer(h, wo, bo, False)


if __name__ == "__main__":
    key = jax.random.PRNGKey(0)
    k_params, k_small, k_big = jax.random.split(key, 3)

    params = make_params(k_params)

    # Small, sublane-aligned batch (single grid step, tm == batch).
    latent_small = jax.random.normal(k_small, (8, LATENT_LENGTH),
                                     dtype=jnp.float32)
    out_small = jax.block_until_ready(decoder_forward(latent_small, params))
    ref_small = decoder_reference(latent_small, params).astype(out_small.dtype)
    np.testing.assert_allclose(np.asarray(out_small.astype(jnp.float32)),
                               np.asarray(ref_small.astype(jnp.float32)),
                               rtol=2e-2, atol=2e-2)
    assert out_small.shape == (8, INPUT_SIZE)

    # batch=300: forced 2-step grid (tm=152), ragged last block (148 valid
    # rows) — exercises the no-pad / no-slice path, the bounded boundary
    # store, the VMEM-resident weights across steps, and the 2-TC split.
    latent_big = jax.random.normal(k_big, (300, LATENT_LENGTH),
                                   dtype=jnp.float32)
    out_big = jax.block_until_ready(decoder_forward(latent_big, params))
    ref_big = decoder_reference(latent_big, params).astype(out_big.dtype)
    np.testing.assert_allclose(np.asarray(out_big.astype(jnp.float32)),
                               np.asarray(ref_big.astype(jnp.float32)),
                               rtol=2e-2, atol=2e-2)
    assert out_big.shape == (300, INPUT_SIZE)

    print("KERNEL_OK")
</pallas_src>

<mosaic_0001>
module attributes {stable_mosaic.version = 11 : i64} {
  func.func @decoder_kernel(%arg0: i32, %arg1: memref<8x32xf32, #tpu.memory_space<vmem>>, %arg2: memref<32x128xbf16, #tpu.memory_space<vmem>>, %arg3: memref<1x128xf32, #tpu.memory_space<vmem>>, %arg4: memref<128x128xbf16, #tpu.memory_space<vmem>>, %arg5: memref<1x128xf32, #tpu.memory_space<vmem>>, %arg6: memref<128x128xbf16, #tpu.memory_space<vmem>>, %arg7: memref<1x128xf32, #tpu.memory_space<vmem>>, %arg8: memref<128x128xbf16, #tpu.memory_space<vmem>>, %arg9: memref<1x128xf32, #tpu.memory_space<vmem>>, %arg10: memref<128x640xbf16, #tpu.memory_space<vmem>>, %arg11: memref<1x640xf32, #tpu.memory_space<vmem>>, %arg12: memref<8x640xbf16, #tpu.memory_space<vmem>>) attributes {dimension_semantics = [#tpu.dimension_semantics<parallel>], iteration_bounds = array<i64: 1>, scalar_prefetch = 0 : i64, scratch_operands = 0 : i64, tpu.core_type = #tpu.core_type<tc>, window_params = [{transform_indices = @transform_0, window_bounds = array<i64: 8, 32>}, {pipeline_mode = #tpu.pipeline_mode<synchronous>, transform_indices = @transform_1, window_bounds = array<i64: 32, 128>}, {pipeline_mode = #tpu.pipeline_mode<synchronous>, transform_indices = @transform_2, window_bounds = array<i64: 1, 128>}, {pipeline_mode = #tpu.pipeline_mode<synchronous>, transform_indices = @transform_3, window_bounds = array<i64: 128, 128>}, {pipeline_mode = #tpu.pipeline_mode<synchronous>, transform_indices = @transform_4, window_bounds = array<i64: 1, 128>}, {pipeline_mode = #tpu.pipeline_mode<synchronous>, transform_indices = @transform_5, window_bounds = array<i64: 128, 128>}, {pipeline_mode = #tpu.pipeline_mode<synchronous>, transform_indices = @transform_6, window_bounds = array<i64: 1, 128>}, {pipeline_mode = #tpu.pipeline_mode<synchronous>, transform_indices = @transform_7, window_bounds = array<i64: 128, 128>}, {pipeline_mode = #tpu.pipeline_mode<synchronous>, transform_indices = @transform_8, window_bounds = array<i64: 1, 128>}, {pipeline_mode = #tpu.pipeline_mode<synchronous>, transform_indices = @transform_9, window_bounds = array<i64: 128, 640>}, {pipeline_mode = #tpu.pipeline_mode<synchronous>, transform_indices = @transform_10, window_bounds = array<i64: 1, 640>}, {transform_indices = @transform_11, window_bounds = array<i64: 8, 640>}]} {
    %c0 = arith.constant 0 : index
    %c0_0 = arith.constant 0 : index
    %0 = vector.load %arg1[%c0, %c0_0] : memref<8x32xf32, #tpu.memory_space<vmem>>, vector<8x32xf32>
    %1 = arith.truncf %0 : vector<8x32xf32> to vector<8x32xbf16>
    %c0_1 = arith.constant 0 : index
    %c0_2 = arith.constant 0 : index
    %2 = vector.load %arg2[%c0_1, %c0_2] : memref<32x128xbf16, #tpu.memory_space<vmem>>, vector<32x128xbf16>
    %cst = arith.constant dense<0.000000e+00> : vector<8x128xf32>
    %3 = tpu.matmul %1, %2, %cst {dimension_numbers = #tpu.dot_dimension_numbers<[1], [0], [0], [1], [0, 0, 1, 1], [], []>} : vector<8x32xbf16>, vector<32x128xbf16>, vector<8x128xf32> -> vector<8x128xf32>
    %c0_3 = arith.constant 0 : index
    %c0_4 = arith.constant 0 : index
    %4 = vector.load %arg3[%c0_3, %c0_4] : memref<1x128xf32, #tpu.memory_space<vmem>>, vector<1x128xf32>
    %5 = vector.broadcast %4 : vector<1x128xf32> to vector<8x128xf32>
    %6 = arith.addf %3, %5 : vector<8x128xf32>
    %cst_5 = arith.constant 0.000000e+00 : f32
    %7 = vector.broadcast %cst_5 : f32 to vector<8x128xf32>
    %8 = arith.maximumf %6, %7 : vector<8x128xf32>
    %9 = arith.truncf %8 : vector<8x128xf32> to vector<8x128xbf16>
    %c0_6 = arith.constant 0 : index
    %c0_7 = arith.constant 0 : index
    %10 = vector.load %arg4[%c0_6, %c0_7] : memref<128x128xbf16, #tpu.memory_space<vmem>>, vector<128x128xbf16>
    %cst_8 = arith.constant dense<0.000000e+00> : vector<8x128xf32>
    %11 = tpu.matmul %9, %10, %cst_8 {dimension_numbers = #tpu.dot_dimension_numbers<[1], [0], [0], [1], [0, 0, 1, 1], [], []>} : vector<8x128xbf16>, vector<128x128xbf16>, vector<8x128xf32> -> vector<8x128xf32>
    %c0_9 = arith.constant 0 : index
    %c0_10 = arith.constant 0 : index
    %12 = vector.load %arg5[%c0_9, %c0_10] : memref<1x128xf32, #tpu.memory_space<vmem>>, vector<1x128xf32>
    %13 = vector.broadcast %12 : vector<1x128xf32> to vector<8x128xf32>
    %14 = arith.addf %11, %13 : vector<8x128xf32>
    %cst_11 = arith.constant 0.000000e+00 : f32
    %15 = vector.broadcast %cst_11 : f32 to vector<8x128xf32>
    %16 = arith.maximumf %14, %15 : vector<8x128xf32>
    %17 = arith.truncf %16 : vector<8x128xf32> to vector<8x128xbf16>
    %c0_12 = arith.constant 0 : index
    %c0_13 = arith.constant 0 : index
    %18 = vector.load %arg6[%c0_12, %c0_13] : memref<128x128xbf16, #tpu.memory_space<vmem>>, vector<128x128xbf16>
    %cst_14 = arith.constant dense<0.000000e+00> : vector<8x128xf32>
    %19 = tpu.matmul %17, %18, %cst_14 {dimension_numbers = #tpu.dot_dimension_numbers<[1], [0], [0], [1], [0, 0, 1, 1], [], []>} : vector<8x128xbf16>, vector<128x128xbf16>, vector<8x128xf32> -> vector<8x128xf32>
    %c0_15 = arith.constant 0 : index
    %c0_16 = arith.constant 0 : index
    %20 = vector.load %arg7[%c0_15, %c0_16] : memref<1x128xf32, #tpu.memory_space<vmem>>, vector<1x128xf32>
    %21 = vector.broadcast %20 : vector<1x128xf32> to vector<8x128xf32>
    %22 = arith.addf %19, %21 : vector<8x128xf32>
    %cst_17 = arith.constant 0.000000e+00 : f32
    %23 = vector.broadcast %cst_17 : f32 to vector<8x128xf32>
    %24 = arith.maximumf %22, %23 : vector<8x128xf32>
    %25 = arith.truncf %24 : vector<8x128xf32> to vector<8x128xbf16>
    %c0_18 = arith.constant 0 : index
    %c0_19 = arith.constant 0 : index
    %26 = vector.load %arg8[%c0_18, %c0_19] : memref<128x128xbf16, #tpu.memory_space<vmem>>, vector<128x128xbf16>
    %cst_20 = arith.constant dense<0.000000e+00> : vector<8x128xf32>
    %27 = tpu.matmul %25, %26, %cst_20 {dimension_numbers = #tpu.dot_dimension_numbers<[1], [0], [0], [1], [0, 0, 1, 1], [], []>} : vector<8x128xbf16>, vector<128x128xbf16>, vector<8x128xf32> -> vector<8x128xf32>
    %c0_21 = arith.constant 0 : index
    %c0_22 = arith.constant 0 : index
    %28 = vector.load %arg9[%c0_21, %c0_22] : memref<1x128xf32, #tpu.memory_space<vmem>>, vector<1x128xf32>
    %29 = vector.broadcast %28 : vector<1x128xf32> to vector<8x128xf32>
    %30 = arith.addf %27, %29 : vector<8x128xf32>
    %cst_23 = arith.constant 0.000000e+00 : f32
    %31 = vector.broadcast %cst_23 : f32 to vector<8x128xf32>
    %32 = arith.maximumf %30, %31 : vector<8x128xf32>
    %33 = arith.truncf %32 : vector<8x128xf32> to vector<8x128xbf16>
    %c0_24 = arith.constant 0 : index
    %c0_25 = arith.constant 0 : index
    %34 = vector.load %arg10[%c0_24, %c0_25] : memref<128x640xbf16, #tpu.memory_space<vmem>>, vector<128x640xbf16>
    %cst_26 = arith.constant dense<0.000000e+00> : vector<8x640xf32>
    %35 = tpu.matmul %33, %34, %cst_26 {dimension_numbers = #tpu.dot_dimension_numbers<[1], [0], [0], [1], [0, 0, 1, 1], [], []>} : vector<8x128xbf16>, vector<128x640xbf16>, vector<8x640xf32> -> vector<8x640xf32>
    %c0_27 = arith.constant 0 : index
    %c0_28 = arith.constant 0 : index
    %36 = vector.load %arg11[%c0_27, %c0_28] : memref<1x640xf32, #tpu.memory_space<vmem>>, vector<1x640xf32>
    %37 = vector.broadcast %36 : vector<1x640xf32> to vector<8x640xf32>
    %38 = arith.addf %35, %37 : vector<8x640xf32>
    %39 = arith.truncf %38 : vector<8x640xf32> to vector<8x640xbf16>
    %c0_29 = arith.constant 0 : index
    %c0_30 = arith.constant 0 : index
    %40 = vector.load %arg12[%c0_29, %c0_30] : memref<8x640xbf16, #tpu.memory_space<vmem>>, vector<8x640xbf16>
    tpu.vector_store %arg12[%c0_29, %c0_30], %39 {strides = array<i32>} : memref<8x640xbf16, #tpu.memory_space<vmem>>, vector<8x640xbf16>,
    return
  }
  func.func @transform_0(%arg0: i32) -> (i32, i32) {
    %c0_i32 = arith.constant 0 : i32
    %c0_i32_0 = arith.constant 0 : i32
    return %arg0, %c0_i32 : i32, i32
  }
  func.func @transform_1(%arg0: i32) -> (i32, i32) {
    %c0_i32 = arith.constant 0 : i32
    %c0_i32_0 = arith.constant 0 : i32
    %c0_i32_1 = arith.constant 0 : i32
    return %c0_i32, %c0_i32_0 : i32, i32
  }
  func.func @transform_2(%arg0: i32) -> (i32, i32) {
    %c0_i32 = arith.constant 0 : i32
    %c0_i32_0 = arith.constant 0 : i32
    %c0_i32_1 = arith.constant 0 : i32
    return %c0_i32, %c0_i32_0 : i32, i32
  }
  func.func @transform_3(%arg0: i32) -> (i32, i32) {
    %c0_i32 = arith.constant 0 : i32
    %c0_i32_0 = arith.constant 0 : i32
    %c0_i32_1 = arith.constant 0 : i32
    return %c0_i32, %c0_i32_0 : i32, i32
  }
  func.func @transform_4(%arg0: i32) -> (i32, i32) {
    %c0_i32 = arith.constant 0 : i32
    %c0_i32_0 = arith.constant 0 : i32
    %c0_i32_1 = arith.constant 0 : i32
    return %c0_i32, %c0_i32_0 : i32, i32
  }
  func.func @transform_5(%arg0: i32) -> (i32, i32) {
    %c0_i32 = arith.constant 0 : i32
    %c0_i32_0 = arith.constant 0 : i32
    %c0_i32_1 = arith.constant 0 : i32
    return %c0_i32, %c0_i32_0 : i32, i32
  }
  func.func @transform_6(%arg0: i32) -> (i32, i32) {
    %c0_i32 = arith.constant 0 : i32
    %c0_i32_0 = arith.constant 0 : i32
    %c0_i32_1 = arith.constant 0 : i32
    return %c0_i32, %c0_i32_0 : i32, i32
  }
  func.func @transform_7(%arg0: i32) -> (i32, i32) {
    %c0_i32 = arith.constant 0 : i32
    %c0_i32_0 = arith.constant 0 : i32
    %c0_i32_1 = arith.constant 0 : i32
    return %c0_i32, %c0_i32_0 : i32, i32
  }
  func.func @transform_8(%arg0: i32) -> (i32, i32) {
    %c0_i32 = arith.constant 0 : i32
    %c0_i32_0 = arith.constant 0 : i32
    %c0_i32_1 = arith.constant 0 : i32
    return %c0_i32, %c0_i32_0 : i32, i32
  }
  func.func @transform_9(%arg0: i32) -> (i32, i32) {
    %c0_i32 = arith.constant 0 : i32
    %c0_i32_0 = arith.constant 0 : i32
    %c0_i32_1 = arith.constant 0 : i32
    return %c0_i32, %c0_i32_0 : i32, i32
  }
  func.func @transform_10(%arg0: i32) -> (i32, i32) {
    %c0_i32 = arith.constant 0 : i32
    %c0_i32_0 = arith.constant 0 : i32
    %c0_i32_1 = arith.constant 0 : i32
    return %c0_i32, %c0_i32_0 : i32, i32
  }
  func.func @transform_11(%arg0: i32) -> (i32, i32) {
    %c0_i32 = arith.constant 0 : i32
    %c0_i32_0 = arith.constant 0 : i32
    return %arg0, %c0_i32 : i32, i32
  }
}

</mosaic_0001>

<llo_original>
// kernel: tpu_custom_call.1
$region0: #{tpu_custom_call.1}
  #allocation0 [shape = 'u32[]', space=smem, size = 0x4, offset = 0x4, fixed_abs, tag = 'smem constant byte address 0x4 - core index']
  #allocation1 [shape = 'u32[144,128]{1,0:T(1,128)}', space=vmem, size = 0x12000, scoped, tag = 'internal scratch']
  %s0 = inlined_call_operand.hbm [shape: f32[8,32], index: 0, kind: input, shape index: {}]
  %s1 = inlined_call_operand.hbm [shape: bf16[32,128], index: 1, kind: input, shape index: {}]
  %s2 = inlined_call_operand.vmem [shape: f32[1,128], index: 2, kind: input, shape index: {}]
  %s3 = inlined_call_operand.hbm [shape: bf16[128,128], index: 3, kind: input, shape index: {}]
  %s4 = inlined_call_operand.vmem [shape: f32[1,128], index: 4, kind: input, shape index: {}]
  %s5 = inlined_call_operand.hbm [shape: bf16[128,128], index: 5, kind: input, shape index: {}]
  %s6 = inlined_call_operand.vmem [shape: f32[1,128], index: 6, kind: input, shape index: {}]
  %s7 = inlined_call_operand.hbm [shape: bf16[128,128], index: 7, kind: input, shape index: {}]
  %s8 = inlined_call_operand.vmem [shape: f32[1,128], index: 8, kind: input, shape index: {}]
  %s9 = inlined_call_operand.hbm [shape: bf16[128,640], index: 9, kind: input, shape index: {}]
  %s10 = inlined_call_operand.vmem [shape: f32[1,640], index: 10, kind: input, shape index: {}]
  %s11 = inlined_call_operand.hbm [shape: bf16[8,640], index: 11, kind: output, shape index: {}]
  %s12 = sld [smem:[#allocation0]]
  $region78: #{tpu_custom_call.1} parent=0
    _
  %s14 = ssub.s32 1, %s12
  %s15 = scalar_select 0, %s14, %s12
  $region1: #{tpu_custom_call.1} parent=0
    #allocation2 [shape = 'u8[4096]{0}', space=vmem, size = 0x1000, scoped, tag = 'input window, operand 0, single buffered']
    #allocation3 [shape = 's32[1]{0}', space=sflag, size = 0x4, scoped, tag = 'scoped memory for tpu_custom_call.1']
    #allocation4 [shape = 's32[1]{0}', space=sflag, size = 0x4, scoped, tag = 'scoped memory for tpu_custom_call.1']
    #allocation5 [shape = 'u8[8192]{0}', space=vmem, size = 0x2000, scoped, tag = 'input window, operand 1, single buffered']
    #allocation6 [shape = 's32[1]{0}', space=sflag, size = 0x4, scoped, tag = 'scoped memory for tpu_custom_call.1']
    #allocation7 [shape = 'u8[32768]{0}', space=vmem, size = 0x8000, scoped, tag = 'input window, operand 3, single buffered']
    #allocation8 [shape = 'u8[32768]{0}', space=vmem, size = 0x8000, scoped, tag = 'input window, operand 5, single buffered']
    #allocation9 [shape = 's32[1]{0}', space=sflag, size = 0x4, scoped, tag = 'scoped memory for tpu_custom_call.1']
    #allocation10 [shape = 'u8[32768]{0}', space=vmem, size = 0x8000, scoped, tag = 'input window, operand 7, single buffered']
    #allocation11 [shape = 'u8[163840]{0}', space=vmem, size = 0x28000, scoped, tag = 'input window, operand 9, single buffered']
    #allocation12 [shape = 's32[1]{0}', space=sflag, size = 0x4, scoped, tag = 'scoped memory for tpu_custom_call.1']
    #allocation13 [shape = 'u8[10240]{0}', space=vmem, size = 0x2800, scoped, tag = 'output window, operand 0, single buffered']
    %16 = vsyncpa [#allocation3], 0
    %17 = vsyncpa [#allocation6], 0
    %18 = vsyncpa [#allocation9], 0
    %19 = vsyncpa [#allocation12], 0
    %20 = vsyncpa [#allocation4], 0
    // Predicated region
    $region2: #{tpu_custom_call.1} parent=1 // pred_check
      _
    $region3: #{tpu_custom_call.1} parent=1 // pred_check_branch
      %22 = sbr.rel (0) target = $region5
    $region4: #{tpu_custom_call.1} parent=1 // pred_region
      %s24 = ssub.s32 128, 128
      %25 = vsyncadd [#allocation3], %s24
      %s27 = sshll.u32 [#allocation2], 4
      %s28 = int_to_ptr.vmem [resolvable:$true] %s27
      %30 = dma.hbm_to_vmem [thread:$0]  %s0, 128, %s28, [#allocation3]
    $region5: #{tpu_custom_call.1} parent=1 // pred_fallthru
      _
    // Predicated region
    $region6: #{tpu_custom_call.1} parent=1 // pred_check
      _
    $region7: #{tpu_custom_call.1} parent=1 // pred_check_branch
      %32 = sbr.rel (0) target = $region9
    $region8: #{tpu_custom_call.1} parent=1 // pred_region
      %s34 = ssub.s32 256, 256
      %35 = vsyncadd [#allocation6], %s34
      %s36 = sshll.u32 [#allocation5], 4
      %s37 = int_to_ptr.vmem [resolvable:$true] %s36
      %42 = dma.hbm_to_vmem [thread:$0]  %s1, 256, %s37, [#allocation6], 64, 64, 4
    $region9: #{tpu_custom_call.1} parent=1 // pred_fallthru
      _
    // Predicated region
    $region10: #{tpu_custom_call.1} parent=1 // pred_check
      _
    $region11: #{tpu_custom_call.1} parent=1 // pred_check_branch
      %44 = sbr.rel (0) target = $region13
    $region12: #{tpu_custom_call.1} parent=1 // pred_region
      _
    $region13: #{tpu_custom_call.1} parent=1 // pred_fallthru
      _
    // Predicated region
    $region14: #{tpu_custom_call.1} parent=1 // pred_check
      _
    $region15: #{tpu_custom_call.1} parent=1 // pred_check_branch
      %46 = sbr.rel (0) target = $region17
    $region16: #{tpu_custom_call.1} parent=1 // pred_region
      %s48 = ssub.s32 1024, 1024
      %49 = vsyncadd [#allocation6], %s48
      %s50 = sshll.u32 [#allocation7], 4
      %s51 = int_to_ptr.vmem [resolvable:$true] %s50
      %56 = dma.hbm_to_vmem [thread:$0]  %s3, 1024, %s51, [#allocation6], 64, 64, 4
    $region17: #{tpu_custom_call.1} parent=1 // pred_fallthru
      _
    // Predicated region
    $region18: #{tpu_custom_call.1} parent=1 // pred_check
      _
    $region19: #{tpu_custom_call.1} parent=1 // pred_check_branch
      %58 = sbr.rel (0) target = $region21
    $region20: #{tpu_custom_call.1} parent=1 // pred_region
      _
    $region21: #{tpu_custom_call.1} parent=1 // pred_fallthru
      _
    // Predicated region
    $region22: #{tpu_custom_call.1} parent=1 // pred_check
      _
    $region23: #{tpu_custom_call.1} parent=1 // pred_check_branch
      %60 = sbr.rel (0) target = $region25
    $region24: #{tpu_custom_call.1} parent=1 // pred_region
      %s62 = ssub.s32 1024, 1024
      %63 = vsyncadd [#allocation9], %s62
      %s64 = sshll.u32 [#allocation8], 4
      %s65 = int_to_ptr.vmem [resolvable:$true] %s64
      %70 = dma.hbm_to_vmem [thread:$0]  %s5, 1024, %s65, [#allocation9], 64, 64, 4
    $region25: #{tpu_custom_call.1} parent=1 // pred_fallthru
      _
    // Predicated region
    $region26: #{tpu_custom_call.1} parent=1 // pred_check
      _
    $region27: #{tpu_custom_call.1} parent=1 // pred_check_branch
      %72 = sbr.rel (0) target = $region29
    $region28: #{tpu_custom_call.1} parent=1 // pred_region
      _
    $region29: #{tpu_custom_call.1} parent=1 // pred_fallthru
      _
    // Predicated region
    $region30: #{tpu_custom_call.1} parent=1 // pred_check
      _
    $region31: #{tpu_custom_call.1} parent=1 // pred_check_branch
      %74 = sbr.rel (0) target = $region33
    $region32: #{tpu_custom_call.1} parent=1 // pred_region
      %s76 = ssub.s32 1024, 1024
      %77 = vsyncadd [#allocation9], %s76
      %s78 = sshll.u32 [#allocation10], 4
      %s79 = int_to_ptr.vmem [resolvable:$true] %s78
      %84 = dma.hbm_to_vmem [thread:$0]  %s7, 1024, %s79, [#allocation9], 64, 64, 4
    $region33: #{tpu_custom_call.1} parent=1 // pred_fallthru
      _
    // Predicated region
    $region34: #{tpu_custom_call.1} parent=1 // pred_check
      _
    $region35: #{tpu_custom_call.1} parent=1 // pred_check_branch
      %86 = sbr.rel (0) target = $region37
    $region36: #{tpu_custom_call.1} parent=1 // pred_region
      _
    $region37: #{tpu_custom_call.1} parent=1 // pred_fallthru
      _
    // Predicated region
    $region38: #{tpu_custom_call.1} parent=1 // pred_check
      _
    $region39: #{tpu_custom_call.1} parent=1 // pred_check_branch
      %88 = sbr.rel (0) target = $region41
    $region40: #{tpu_custom_call.1} parent=1 // pred_region
      %s90 = ssub.s32 5120, 5120
      %91 = vsyncadd [#allocation12], %s90
      %s92 = sshll.u32 [#allocation11], 4
      %s93 = int_to_ptr.vmem [resolvable:$true] %s92
      %98 = dma.hbm_to_vmem [thread:$0]  %s9, 5120, %s93, [#allocation12], 320, 320, 20
    $region41: #{tpu_custom_call.1} parent=1 // pred_fallthru
      _
    // Predicated region
    $region42: #{tpu_custom_call.1} parent=1 // pred_check
      _
    $region43: #{tpu_custom_call.1} parent=1 // pred_check_branch
      %100 = sbr.rel (0) target = $region45
    $region44: #{tpu_custom_call.1} parent=1 // pred_region
      _
    $region45: #{tpu_custom_call.1} parent=1 // pred_fallthru
      _
    // Predicated region
    $region46: #{tpu_custom_call.1} parent=1 // pred_check
      _
    $region47: #{tpu_custom_call.1} parent=1 // pred_check_branch
      %102 = sbr.rel (0) target = $region49
    $region48: #{tpu_custom_call.1} parent=1 // pred_region
      %103 = dma.done [#allocation3], 128
    $region49: #{tpu_custom_call.1} parent=1 // pred_fallthru
      _
    // Predicated region
    $region50: #{tpu_custom_call.1} parent=1 // pred_check
      _
    $region51: #{tpu_custom_call.1} parent=1 // pred_check_branch
      %105 = sbr.rel (0) target = $region53
    $region52: #{tpu_custom_call.1} parent=1 // pred_region
      %106 = dma.done [#allocation6], 256
    $region53: #{tpu_custom_call.1} parent=1 // pred_fallthru
      _
    // Predicated region
    $region54: #{tpu_custom_call.1} parent=1 // pred_check
      _
    $region55: #{tpu_custom_call.1} parent=1 // pred_check_branch
      %108 = sbr.rel (0) target = $region57
    $region56: #{tpu_custom_call.1} parent=1 // pred_region
      %109 = dma.done [#allocation6], 1024
    $region57: #{tpu_custom_call.1} parent=1 // pred_fallthru
      _
    // Predicated region
    $region58: #{tpu_custom_call.1} parent=1 // pred_check
      _
    $region59: #{tpu_custom_call.1} parent=1 // pred_check_branch
      %111 = sbr.rel (0) target = $region61
    $region60: #{tpu_custom_call.1} parent=1 // pred_region
      %112 = dma.done [#allocation9], 1024
    $region61: #{tpu_custom_call.1} parent=1 // pred_fallthru
      _
    // Predicated region
    $region62: #{tpu_custom_call.1} parent=1 // pred_check
      _
    $region63: #{tpu_custom_call.1} parent=1 // pred_check_branch
      %114 = sbr.rel (0) target = $region65
    $region64: #{tpu_custom_call.1} parent=1 // pred_region
      %115 = dma.done [#allocation9], 1024
    $region65: #{tpu_custom_call.1} parent=1 // pred_fallthru
      _
    // Predicated region
    $region66: #{tpu_custom_call.1} parent=1 // pred_check
      _
    $region67: #{tpu_custom_call.1} parent=1 // pred_check_branch
      %117 = sbr.rel (0) target = $region69
    $region68: #{tpu_custom_call.1} parent=1 // pred_region
      %118 = dma.done [#allocation12], 5120
    $region69: #{tpu_custom_call.1} parent=1 // pred_fallthru
      _
    %v120 = vld [vmem:[#allocation2] sm:$0xff]
    %v121 = vpack.c.bf16 %v120, %v120
    %v122 = vld [vmem:[#allocation5] sm:$0xf]
    %v123 = vld [vmem:[#allocation5 + $0x4] sm:$0xf]
    %v124 = vld [vmem:[#allocation5 + $0x8] sm:$0xf]
    %v125 = vld [vmem:[#allocation5 + $0xc] sm:$0xf]
    %v126 = vld [vmem:[%s2] sm:$0x1]
    %v128 = vlaneseq
    %v129 = vshrl.u32 %v128, 7
    %v130 = vsub.s32 0, %v129
    %v131 = vrot.slane %v126, %v130
    %v137 = vunpack.c.l.b16 %v122
    %v138 = vunpack.c.l.b16 %v123
    %v139 = vunpack.c.l.b16 %v124
    %v140 = vunpack.c.l.b16 %v125
    %v141 = vpack.c.b16 %v138, %v137
    %v142 = vpack.c.b16 %v140, %v139
    %vm145 = vcmask 261120
    %v147 = vsel %vm145, %v121, 0
    %149 = vmatprep.subr.bf16.mxu0 0
    %150 = vmatpush1.bf16.msra.mxu0 %v141
    %151 = vmatprep.subr.bf16.mxu0 0
    %152 = vmatpush1.bf16.msra.mxu0 %v142
    %153 = vmatprep.subr.bf16.mxu0 0
    %154 = vmatpush1.bf16.msra.mxu0 0
    %155 = vmatprep.subr.bf16.mxu0 0
    %156 = vmatpush1.bf16.msra.mxu0 0
    %157 = vmatprep.subr.bf16.mxu0 0
    %158 = vmatpush1.bf16.msra.mxu0 0
    %159 = vmatprep.subr.bf16.mxu0 0
    %160 = vmatpush1.bf16.msra.mxu0 0
    %161 = vmatprep.subr.bf16.mxu0 0
    %162 = vmatpush1.bf16.msra.mxu0 0
    %163 = vmatprep.subr.bf16.mxu0 0
    %164 = vmatpush1.bf16.msra.mxu0 0
    %165 = vmatprep.subr.bf16.mxu0 0
    %166 = vmatpush1.bf16.msra.mxu0 0
    %167 = vmatprep.subr.bf16.mxu0 0
    %168 = vmatpush1.bf16.msra.mxu0 0
    %169 = vmatprep.subr.bf16.mxu0 0
    %170 = vmatpush1.bf16.msra.mxu0 0
    %171 = vmatprep.subr.bf16.mxu0 0
    %172 = vmatpush1.bf16.msra.mxu0 0
    %173 = vmatprep.subr.bf16.mxu0 0
    %174 = vmatpush1.bf16.msra.mxu0 0
    %175 = vmatprep.subr.bf16.mxu0 0
    %176 = vmatpush1.bf16.msra.mxu0 0
    %177 = vmatprep.subr.bf16.mxu0 0
    %178 = vmatpush1.bf16.msra.mxu0 0
    %179 = vmatprep.subr.bf16.mxu0 0
    %180 = vmatpush1.bf16.msra.mxu0 0
    %181 = vmatprep.mubr.bf16.mxu0 0
    %182 = vmatmul.mubr.bf16.gmra.mrb[0].mxu0 %v147
    %v183 = vpop.f32.mrb[0].mxu0
    %v184 = vadd.f32 %v131, %v183
    %v185 = vpop.f32.mrb[0].mxu0
    %v186 = vpop.f32.mrb[0].mxu0
    %v187 = vpop.f32.mrb[0].mxu0
    %188 = vdwg.mxu0
    %v189 = vmax.f32 %v184, 0.0
    %v190 = vpack.c.bf16 %v189, %v189
    %v191 = vld [vmem:[#allocation7] sm:$0xf]
    %v192 = vld [vmem:[#allocation7 + $0x4] sm:$0xf]
    %v193 = vld [vmem:[#allocation7 + $0x8] sm:$0xf]
    %v194 = vld [vmem:[#allocation7 + $0xc] sm:$0xf]
    %v195 = vld [vmem:[#allocation7 + $0x10] sm:$0xf]
    %v196 = vld [vmem:[#allocation7 + $0x14] sm:$0xf]
    %v197 = vld [vmem:[#allocation7 + $0x18] sm:$0xf]
    %v198 = vld [vmem:[#allocation7 + $0x1c] sm:$0xf]
    %v199 = vld [vmem:[#allocation7 + $0x20] sm:$0xf]
    %v200 = vld [vmem:[#allocation7 + $0x24] sm:$0xf]
    %v201 = vld [vmem:[#allocation7 + $0x28] sm:$0xf]
    %v202 = vld [vmem:[#allocation7 + $0x2c] sm:$0xf]
    %v203 = vld [vmem:[#allocation7 + $0x30] sm:$0xf]
    %v204 = vld [vmem:[#allocation7 + $0x34] sm:$0xf]
    %v205 = vld [vmem:[#allocation7 + $0x38] sm:$0xf]
    %v206 = vld [vmem:[#allocation7 + $0x3c] sm:$0xf]
    %v207 = vld [vmem:[%s4] sm:$0x1]
    %v209 = vlaneseq
    %v210 = vshrl.u32 %v209, 7
    %v211 = vsub.s32 0, %v210
    %v212 = vrot.slane %v207, %v211
    %v230 = vunpack.c.l.b16 %v191
    %v231 = vunpack.c.l.b16 %v192
    %v232 = vunpack.c.l.b16 %v193
    %v233 = vunpack.c.l.b16 %v194
    %v234 = vunpack.c.l.b16 %v195
    %v235 = vunpack.c.l.b16 %v196
    %v236 = vunpack.c.l.b16 %v197
    %v237 = vunpack.c.l.b16 %v198
    %v238 = vunpack.c.l.b16 %v199
    %v239 = vunpack.c.l.b16 %v200
    %v240 = vunpack.c.l.b16 %v201
    %v241 = vunpack.c.l.b16 %v202
    %v242 = vunpack.c.l.b16 %v203
    %v243 = vunpack.c.l.b16 %v204
    %v244 = vunpack.c.l.b16 %v205
    %v245 = vunpack.c.l.b16 %v206
    %v246 = vpack.c.b16 %v231, %v230
    %v247 = vpack.c.b16 %v233, %v232
    %v248 = vpack.c.b16 %v235, %v234
    %v249 = vpack.c.b16 %v237, %v236
    %v250 = vpack.c.b16 %v239, %v238
    %v251 = vpack.c.b16 %v241, %v240
    %v252 = vpack.c.b16 %v243, %v242
    %v253 = vpack.c.b16 %v245, %v244
    %262 = vmatprep.subr.bf16.mxu0 0
    %263 = vmatpush1.bf16.msra.mxu0 %v246
    %264 = vmatprep.subr.bf16.mxu0 0
    %265 = vmatpush1.bf16.msra.mxu0 %v247
    %266 = vmatprep.subr.bf16.mxu0 0
    %267 = vmatpush1.bf16.msra.mxu0 %v248
    %268 = vmatprep.subr.bf16.mxu0 0
    %269 = vmatpush1.bf16.msra.mxu0 %v249
    %270 = vmatprep.subr.bf16.mxu0 0
    %271 = vmatpush1.bf16.msra.mxu0 %v250
    %272 = vmatprep.subr.bf16.mxu0 0
    %273 = vmatpush1.bf16.msra.mxu0 %v251
    %274 = vmatprep.subr.bf16.mxu0 0
    %275 = vmatpush1.bf16.msra.mxu0 %v252
    %276 = vmatprep.subr.bf16.mxu0 0
    %277 = vmatpush1.bf16.msra.mxu0 %v253
    %278 = vmatprep.subr.bf16.mxu0 0
    %279 = vmatpush1.bf16.msra.mxu0 0
    %280 = vmatprep.subr.bf16.mxu0 0
    %281 = vmatpush1.bf16.msra.mxu0 0
    %282 = vmatprep.subr.bf16.mxu0 0
    %283 = vmatpush1.bf16.msra.mxu0 0
    %284 = vmatprep.subr.bf16.mxu0 0
    %285 = vmatpush1.bf16.msra.mxu0 0
    %286 = vmatprep.subr.bf16.mxu0 0
    %287 = vmatpush1.bf16.msra.mxu0 0
    %288 = vmatprep.subr.bf16.mxu0 0
    %289 = vmatpush1.bf16.msra.mxu0 0
    %290 = vmatprep.subr.bf16.mxu0 0
    %291 = vmatpush1.bf16.msra.mxu0 0
    %292 = vmatprep.subr.bf16.mxu0 0
    %293 = vmatpush1.bf16.msra.mxu0 0
    %294 = vmatprep.mubr.bf16.mxu0 0
    %295 = vmatmul.mubr.bf16.gmra.mrb[0].mxu0 %v190
    %v296 = vpop.f32.mrb[0].mxu0
    %v297 = vadd.f32 %v212, %v296
    %v298 = vpop.f32.mrb[0].mxu0
    %v299 = vpop.f32.mrb[0].mxu0
    %v300 = vpop.f32.mrb[0].mxu0
    %301 = vdwg.mxu0
    %v302 = vmax.f32 %v297, 0.0
    %v303 = vpack.c.bf16 %v302, %v302
    %v304 = vld [vmem:[#allocation8] sm:$0xf]
    %v305 = vld [vmem:[#allocation8 + $0x4] sm:$0xf]
    %v306 = vld [vmem:[#allocation8 + $0x8] sm:$0xf]
    %v307 = vld [vmem:[#allocation8 + $0xc] sm:$0xf]
    %v308 = vld [vmem:[#allocation8 + $0x10] sm:$0xf]
    %v309 = vld [vmem:[#allocation8 + $0x14] sm:$0xf]
    %v310 = vld [vmem:[#allocation8 + $0x18] sm:$0xf]
    %v311 = vld [vmem:[#allocation8 + $0x1c] sm:$0xf]
    %v312 = vld [vmem:[#allocation8 + $0x20] sm:$0xf]
    %v313 = vld [vmem:[#allocation8 + $0x24] sm:$0xf]
    %v314 = vld [vmem:[#allocation8 + $0x28] sm:$0xf]
    %v315 = vld [vmem:[#allocation8 + $0x2c] sm:$0xf]
    %v316 = vld [vmem:[#allocation8 + $0x30] sm:$0xf]
    %v317 = vld [vmem:[#allocation8 + $0x34] sm:$0xf]
    %v318 = vld [vmem:[#allocation8 + $0x38] sm:$0xf]
    %v319 = vld [vmem:[#allocation8 + $0x3c] sm:$0xf]
    %v320 = vld [vmem:[%s6] sm:$0x1]
    %v322 = vlaneseq
    %v323 = vshrl.u32 %v322, 7
    %v324 = vsub.s32 0, %v323
    %v325 = vrot.slane %v320, %v324
    %v343 = vunpack.c.l.b16 %v304
    %v344 = vunpack.c.l.b16 %v305
    %v345 = vunpack.c.l.b16 %v306
    %v346 = vunpack.c.l.b16 %v307
    %v347 = vunpack.c.l.b16 %v308
    %v348 = vunpack.c.l.b16 %v309
    %v349 = vunpack.c.l.b16 %v310
    %v350 = vunpack.c.l.b16 %v311
    %v351 = vunpack.c.l.b16 %v312
    %v352 = vunpack.c.l.b16 %v313
    %v353 = vunpack.c.l.b16 %v314
    %v354 = vunpack.c.l.b16 %v315
    %v355 = vunpack.c.l.b16 %v316
    %v356 = vunpack.c.l.b16 %v317
    %v357 = vunpack.c.l.b16 %v318
    %v358 = vunpack.c.l.b16 %v319
    %v359 = vpack.c.b16 %v344, %v343
    %v360 = vpack.c.b16 %v346, %v345
    %v361 = vpack.c.b16 %v348, %v347
    %v362 = vpack.c.b16 %v350, %v349
    %v363 = vpack.c.b16 %v352, %v351
    %v364 = vpack.c.b16 %v354, %v353
    %v365 = vpack.c.b16 %v356, %v355
    %v366 = vpack.c.b16 %v358, %v357
    %375 = vmatprep.subr.bf16.mxu0 0
    %376 = vmatpush1.bf16.msra.mxu0 %v359
    %377 = vmatprep.subr.bf16.mxu0 0
    %378 = vmatpush1.bf16.msra.mxu0 %v360
    %379 = vmatprep.subr.bf16.mxu0 0
    %380 = vmatpush1.bf16.msra.mxu0 %v361
    %381 = vmatprep.subr.bf16.mxu0 0
    %382 = vmatpush1.bf16.msra.mxu0 %v362
    %383 = vmatprep.subr.bf16.mxu0 0
    %384 = vmatpush1.bf16.msra.mxu0 %v363
    %385 = vmatprep.subr.bf16.mxu0 0
    %386 = vmatpush1.bf16.msra.mxu0 %v364
    %387 = vmatprep.subr.bf16.mxu0 0
    %388 = vmatpush1.bf16.msra.mxu0 %v365
    %389 = vmatprep.subr.bf16.mxu0 0
    %390 = vmatpush1.bf16.msra.mxu0 %v366
    %391 = vmatprep.subr.bf16.mxu0 0
    %392 = vmatpush1.bf16.msra.mxu0 0
    %393 = vmatprep.subr.bf16.mxu0 0
    %394 = vmatpush1.bf16.msra.mxu0 0
    %395 = vmatprep.subr.bf16.mxu0 0
    %396 = vmatpush1.bf16.msra.mxu0 0
    %397 = vmatprep.subr.bf16.mxu0 0
    %398 = vmatpush1.bf16.msra.mxu0 0
    %399 = vmatprep.subr.bf16.mxu0 0
    %400 = vmatpush1.bf16.msra.mxu0 0
    %401 = vmatprep.subr.bf16.mxu0 0
    %402 = vmatpush1.bf16.msra.mxu0 0
    %403 = vmatprep.subr.bf16.mxu0 0
    %404 = vmatpush1.bf16.msra.mxu0 0
    %405 = vmatprep.subr.bf16.mxu0 0
    %406 = vmatpush1.bf16.msra.mxu0 0
    %407 = vmatprep.mubr.bf16.mxu0 0
    %408 = vmatmul.mubr.bf16.gmra.mrb[0].mxu0 %v303
    %v409 = vpop.f32.mrb[0].mxu0
    %v410 = vadd.f32 %v325, %v409
    %v411 = vpop.f32.mrb[0].mxu0
    %v412 = vpop.f32.mrb[0].mxu0
    %v413 = vpop.f32.mrb[0].mxu0
    %414 = vdwg.mxu0
    %v415 = vmax.f32 %v410, 0.0
    %v416 = vpack.c.bf16 %v415, %v415
    %v417 = vld [vmem:[#allocation10] sm:$0xf]
    %v418 = vld [vmem:[#allocation10 + $0x4] sm:$0xf]
    %v419 = vld [vmem:[#allocation10 + $0x8] sm:$0xf]
    %v420 = vld [vmem:[#allocation10 + $0xc] sm:$0xf]
    %v421 = vld [vmem:[#allocation10 + $0x10] sm:$0xf]
    %v422 = vld [vmem:[#allocation10 + $0x14] sm:$0xf]
    %v423 = vld [vmem:[#allocation10 + $0x18] sm:$0xf]
    %v424 = vld [vmem:[#allocation10 + $0x1c] sm:$0xf]
    %v425 = vld [vmem:[#allocation10 + $0x20] sm:$0xf]
    %v426 = vld [vmem:[#allocation10 + $0x24] sm:$0xf]
    %v427 = vld [vmem:[#allocation10 + $0x28] sm:$0xf]
    %v428 = vld [vmem:[#allocation10 + $0x2c] sm:$0xf]
    %v429 = vld [vmem:[#allocation10 + $0x30] sm:$0xf]
    %v430 = vld [vmem:[#allocation10 + $0x34] sm:$0xf]
    %v431 = vld [vmem:[#allocation10 + $0x38] sm:$0xf]
    %v432 = vld [vmem:[#allocation10 + $0x3c] sm:$0xf]
    %v433 = vld [vmem:[%s8] sm:$0x1]
    %v435 = vlaneseq
    %v436 = vshrl.u32 %v435, 7
    %v437 = vsub.s32 0, %v436
    %v438 = vrot.slane %v433, %v437
    %v456 = vunpack.c.l.b16 %v417
    %v457 = vunpack.c.l.b16 %v418
    %v458 = vunpack.c.l.b16 %v419
    %v459 = vunpack.c.l.b16 %v420
    %v460 = vunpack.c.l.b16 %v421
    %v461 = vunpack.c.l.b16 %v422
    %v462 = vunpack.c.l.b16 %v423
    %v463 = vunpack.c.l.b16 %v424
    %v464 = vunpack.c.l.b16 %v425
    %v465 = vunpack.c.l.b16 %v426
    %v466 = vunpack.c.l.b16 %v427
    %v467 = vunpack.c.l.b16 %v428
    %v468 = vunpack.c.l.b16 %v429
    %v469 = vunpack.c.l.b16 %v430
    %v470 = vunpack.c.l.b16 %v431
    %v471 = vunpack.c.l.b16 %v432
    %v472 = vpack.c.b16 %v457, %v456
    %v473 = vpack.c.b16 %v459, %v458
    %v474 = vpack.c.b16 %v461, %v460
    %v475 = vpack.c.b16 %v463, %v462
    %v476 = vpack.c.b16 %v465, %v464
    %v477 = vpack.c.b16 %v467, %v466
    %v478 = vpack.c.b16 %v469, %v468
    %v479 = vpack.c.b16 %v471, %v470
    %488 = vmatprep.subr.bf16.mxu0 0
    %489 = vmatpush1.bf16.msra.mxu0 %v472
    %490 = vmatprep.subr.bf16.mxu0 0
    %491 = vmatpush1.bf16.msra.mxu0 %v473
    %492 = vmatprep.subr.bf16.mxu0 0
    %493 = vmatpush1.bf16.msra.mxu0 %v474
    %494 = vmatprep.subr.bf16.mxu0 0
    %495 = vmatpush1.bf16.msra.mxu0 %v475
    %496 = vmatprep.subr.bf16.mxu0 0
    %497 = vmatpush1.bf16.msra.mxu0 %v476
    %498 = vmatprep.subr.bf16.mxu0 0
    %499 = vmatpush1.bf16.msra.mxu0 %v477
    %500 = vmatprep.subr.bf16.mxu0 0
    %501 = vmatpush1.bf16.msra.mxu0 %v478
    %502 = vmatprep.subr.bf16.mxu0 0
    %503 = vmatpush1.bf16.msra.mxu0 %v479
    %504 = vmatprep.subr.bf16.mxu0 0
    %505 = vmatpush1.bf16.msra.mxu0 0
    %506 = vmatprep.subr.bf16.mxu0 0
    %507 = vmatpush1.bf16.msra.mxu0 0
    %508 = vmatprep.subr.bf16.mxu0 0
    %509 = vmatpush1.bf16.msra.mxu0 0
    %510 = vmatprep.subr.bf16.mxu0 0
    %511 = vmatpush1.bf16.msra.mxu0 0
    %512 = vmatprep.subr.bf16.mxu0 0
    %513 = vmatpush1.bf16.msra.mxu0 0
    %514 = vmatprep.subr.bf16.mxu0 0
    %515 = vmatpush1.bf16.msra.mxu0 0
    %516 = vmatprep.subr.bf16.mxu0 0
    %517 = vmatpush1.bf16.msra.mxu0 0
    %518 = vmatprep.subr.bf16.mxu0 0
    %519 = vmatpush1.bf16.msra.mxu0 0
    %520 = vmatprep.mubr.bf16.mxu0 0
    %521 = vmatmul.mubr.bf16.gmra.mrb[0].mxu0 %v416
    %v522 = vpop.f32.mrb[0].mxu0
    %v523 = vadd.f32 %v438, %v522
    %v524 = vpop.f32.mrb[0].mxu0
    %v525 = vpop.f32.mrb[0].mxu0
    %v526 = vpop.f32.mrb[0].mxu0
    %527 = vdwg.mxu0
    %v528 = vmax.f32 %v523, 0.0
    %v529 = vpack.c.bf16 %v528, %v528
    %v530 = vld [vmem:[#allocation11] sm:$0xff]
    %v531 = vld [vmem:[#allocation11 + $0x8] sm:$0xff]
    %v532 = vld [vmem:[#allocation11 + $0x10] sm:$0xf]
    %v533 = vld [vmem:[#allocation11 + $0x14] sm:$0xff]
    %v534 = vld [vmem:[#allocation11 + $0x1c] sm:$0xff]
    %v535 = vld [vmem:[#allocation11 + $0x24] sm:$0xf]
    %v536 = vld [vmem:[#allocation11 + $0x28] sm:$0xff]
    %v537 = vld [vmem:[#allocation11 + $0x30] sm:$0xff]
    %v538 = vld [vmem:[#allocation11 + $0x38] sm:$0xf]
    %v539 = vld [vmem:[#allocation11 + $0x3c] sm:$0xff]
    %v540 = vld [vmem:[#allocation11 + $0x44] sm:$0xff]
    %v541 = vld [vmem:[#allocation11 + $0x4c] sm:$0xf]
    %v542 = vld [vmem:[#allocation11 + $0x50] sm:$0xff]
    %v543 = vld [vmem:[#allocation11 + $0x58] sm:$0xff]
    %v544 = vld [vmem:[#allocation11 + $0x60] sm:$0xf]
    %v545 = vld [vmem:[#allocation11 + $0x64] sm:$0xff]
    %v546 = vld [vmem:[#allocation11 + $0x6c] sm:$0xff]
    %v547 = vld [vmem:[#allocation11 + $0x74] sm:$0xf]
    %v548 = vld [vmem:[#allocation11 + $0x78] sm:$0xff]
    %v549 = vld [vmem:[#allocation11 + $0x80] sm:$0xff]
    %v550 = vld [vmem:[#allocation11 + $0x88] sm:$0xf]
    %v551 = vld [vmem:[#allocation11 + $0x8c] sm:$0xff]
    %v552 = vld [vmem:[#allocation11 + $0x94] sm:$0xff]
    %v553 = vld [vmem:[#allocation11 + $0x9c] sm:$0xf]
    %v554 = vld [vmem:[#allocation11 + $0xa0] sm:$0xff]
    %v555 = vld [vmem:[#allocation11 + $0xa8] sm:$0xff]
    %v556 = vld [vmem:[#allocation11 + $0xb0] sm:$0xf]
    %v557 = vld [vmem:[#allocation11 + $0xb4] sm:$0xff]
    %v558 = vld [vmem:[#allocation11 + $0xbc] sm:$0xff]
    %v559 = vld [vmem:[#allocation11 + $0xc4] sm:$0xf]
    %v560 = vld [vmem:[#allocation11 + $0xc8] sm:$0xff]
    %v561 = vld [vmem:[#allocation11 + $0xd0] sm:$0xff]
    %v562 = vld [vmem:[#allocation11 + $0xd8] sm:$0xf]
    %v563 = vld [vmem:[#allocation11 + $0xdc] sm:$0xff]
    %v564 = vld [vmem:[#allocation11 + $0xe4] sm:$0xff]
    %v565 = vld [vmem:[#allocation11 + $0xec] sm:$0xf]
    %v566 = vld [vmem:[#allocation11 + $0xf0] sm:$0xff]
    %v567 = vld [vmem:[#allocation11 + $0xf8] sm:$0xff]
    %v568 = vld [vmem:[#allocation11 + $0x100] sm:$0xf]
    %v569 = vld [vmem:[#allocation11 + $0x104] sm:$0xff]
    %v570 = vld [vmem:[#allocation11 + $0x10c] sm:$0xff]
    %v571 = vld [vmem:[#allocation11 + $0x114] sm:$0xf]
    %v572 = vld [vmem:[#allocation11 + $0x118] sm:$0xff]
    %v573 = vld [vmem:[#allocation11 + $0x120] sm:$0xff]
    %v574 = vld [vmem:[#allocation11 + $0x128] sm:$0xf]
    %v575 = vld [vmem:[#allocation11 + $0x12c] sm:$0xff]
    %v576 = vld [vmem:[#allocation11 + $0x134] sm:$0xff]
    %v577 = vld [vmem:[#allocation11 + $0x13c] sm:$0xf]
    %v578 = vld [vmem:[%s10] sm:$0x1f]
    %v580 = vlaneseq
    %v581 = vshrl.u32 %v580, 7
    %v582 = vsub.s32 0, %v581
    %v583 = vrot.slane %v578, %v582
    %v584 = vlaneseq
    %v585 = vshrl.u32 %v584, 7
    %v586 = vsub.s32 1, %v585
    %v587 = vrot.slane %v578, %v586
    %v588 = vlaneseq
    %v589 = vshrl.u32 %v588, 7
    %v590 = vsub.s32 2, %v589
    %v591 = vrot.slane %v578, %v590
    %v592 = vlaneseq
    %v593 = vshrl.u32 %v592, 7
    %v594 = vsub.s32 3, %v593
    %v595 = vrot.slane %v578, %v594
    %v596 = vlaneseq
    %v597 = vshrl.u32 %v596, 7
    %v598 = vsub.s32 4, %v597
    %v599 = vrot.slane %v578, %v598
    %v653 = vunpack.c.l.b16 %v530
    %v654 = vunpack.c.h.b16 %v530
    %v655 = vunpack.c.l.b16 %v531
    %v656 = vunpack.c.h.b16 %v531
    %v657 = vunpack.c.l.b16 %v532
    %v658 = vunpack.c.l.b16 %v533
    %v659 = vunpack.c.h.b16 %v533
    %v660 = vunpack.c.l.b16 %v534
    %v661 = vunpack.c.h.b16 %v534
    %v662 = vunpack.c.l.b16 %v535
    %v663 = vunpack.c.l.b16 %v536
    %v664 = vunpack.c.h.b16 %v536
    %v665 = vunpack.c.l.b16 %v537
    %v666 = vunpack.c.h.b16 %v537
    %v667 = vunpack.c.l.b16 %v538
    %v668 = vunpack.c.l.b16 %v539
    %v669 = vunpack.c.h.b16 %v539
    %v670 = vunpack.c.l.b16 %v540
    %v671 = vunpack.c.h.b16 %v540
    %v672 = vunpack.c.l.b16 %v541
    %v673 = vunpack.c.l.b16 %v542
    %v674 = vunpack.c.h.b16 %v542
    %v675 = vunpack.c.l.b16 %v543
    %v676 = vunpack.c.h.b16 %v543
    %v677 = vunpack.c.l.b16 %v544
    %v678 = vunpack.c.l.b16 %v545
    %v679 = vunpack.c.h.b16 %v545
    %v680 = vunpack.c.l.b16 %v546
    %v681 = vunpack.c.h.b16 %v546
    %v682 = vunpack.c.l.b16 %v547
    %v683 = vunpack.c.l.b16 %v548
    %v684 = vunpack.c.h.b16 %v548
    %v685 = vunpack.c.l.b16 %v549
    %v686 = vunpack.c.h.b16 %v549
    %v687 = vunpack.c.l.b16 %v550
    %v688 = vunpack.c.l.b16 %v551
    %v689 = vunpack.c.h.b16 %v551
    %v690 = vunpack.c.l.b16 %v552
    %v691 = vunpack.c.h.b16 %v552
    %v692 = vunpack.c.l.b16 %v553
    %v693 = vunpack.c.l.b16 %v554
    %v694 = vunpack.c.h.b16 %v554
    %v695 = vunpack.c.l.b16 %v555
    %v696 = vunpack.c.h.b16 %v555
    %v697 = vunpack.c.l.b16 %v556
    %v698 = vunpack.c.l.b16 %v557
    %v699 = vunpack.c.h.b16 %v557
    %v700 = vunpack.c.l.b16 %v558
    %v701 = vunpack.c.h.b16 %v558
    %v702 = vunpack.c.l.b16 %v559
    %v703 = vunpack.c.l.b16 %v560
    %v704 = vunpack.c.h.b16 %v560
    %v705 = vunpack.c.l.b16 %v561
    %v706 = vunpack.c.h.b16 %v561
    %v707 = vunpack.c.l.b16 %v562
    %v708 = vunpack.c.l.b16 %v563
    %v709 = vunpack.c.h.b16 %v563
    %v710 = vunpack.c.l.b16 %v564
    %v711 = vunpack.c.h.b16 %v564
    %v712 = vunpack.c.l.b16 %v565
    %v713 = vunpack.c.l.b16 %v566
    %v714 = vunpack.c.h.b16 %v566
    %v715 = vunpack.c.l.b16 %v567
    %v716 = vunpack.c.h.b16 %v567
    %v717 = vunpack.c.l.b16 %v568
    %v718 = vunpack.c.l.b16 %v569
    %v719 = vunpack.c.h.b16 %v569
    %v720 = vunpack.c.l.b16 %v570
    %v721 = vunpack.c.h.b16 %v570
    %v722 = vunpack.c.l.b16 %v571
    %v723 = vunpack.c.l.b16 %v572
    %v724 = vunpack.c.h.b16 %v572
    %v725 = vunpack.c.l.b16 %v573
    %v726 = vunpack.c.h.b16 %v573
    %v727 = vunpack.c.l.b16 %v574
    %v728 = vunpack.c.l.b16 %v575
    %v729 = vunpack.c.h.b16 %v575
    %v730 = vunpack.c.l.b16 %v576
    %v731 = vunpack.c.h.b16 %v576
    %v732 = vunpack.c.l.b16 %v577
    %v733 = vpack.c.b16 %v658, %v653
    %v734 = vpack.c.b16 %v659, %v654
    %v735 = vpack.c.b16 %v660, %v655
    %v736 = vpack.c.b16 %v661, %v656
    %v737 = vpack.c.b16 %v662, %v657
    %v738 = vpack.c.b16 %v668, %v663
    %v739 = vpack.c.b16 %v669, %v664
    %v740 = vpack.c.b16 %v670, %v665
    %v741 = vpack.c.b16 %v671, %v666
    %v742 = vpack.c.b16 %v672, %v667
    %v743 = vpack.c.b16 %v678, %v673
    %v744 = vpack.c.b16 %v679, %v674
    %v745 = vpack.c.b16 %v680, %v675
    %v746 = vpack.c.b16 %v681, %v676
    %v747 = vpack.c.b16 %v682, %v677
    %v748 = vpack.c.b16 %v688, %v683
    %v749 = vpack.c.b16 %v689, %v684
    %v750 = vpack.c.b16 %v690, %v685
    %v751 = vpack.c.b16 %v691, %v686
    %v752 = vpack.c.b16 %v692, %v687
    %v753 = vpack.c.b16 %v698, %v693
    %v754 = vpack.c.b16 %v699, %v694
    %v755 = vpack.c.b16 %v700, %v695
    %v756 = vpack.c.b16 %v701, %v696
    %v757 = vpack.c.b16 %v702, %v697
    %v758 = vpack.c.b16 %v708, %v703
    %v759 = vpack.c.b16 %v709, %v704
    %v760 = vpack.c.b16 %v710, %v705
    %v761 = vpack.c.b16 %v711, %v706
    %v762 = vpack.c.b16 %v712, %v707
    %v763 = vpack.c.b16 %v718, %v713
    %v764 = vpack.c.b16 %v719, %v714
    %v765 = vpack.c.b16 %v720, %v715
    %v766 = vpack.c.b16 %v721, %v716
    %v767 = vpack.c.b16 %v722, %v717
    %v768 = vpack.c.b16 %v728, %v723
    %v769 = vpack.c.b16 %v729, %v724
    %v770 = vpack.c.b16 %v730, %v725
    %v771 = vpack.c.b16 %v731, %v726
    %v772 = vpack.c.b16 %v732, %v727
    %813 = vmatprep.subr.bf16.mxu0 %v734
    %814 = vmatpush1.bf16.msra.mxu0 %v733
    %815 = vmatprep.subr.bf16.mxu0 %v739
    %816 = vmatpush1.bf16.msra.mxu0 %v738
    %817 = vmatprep.subr.bf16.mxu0 %v744
    %818 = vmatpush1.bf16.msra.mxu0 %v743
    %819 = vmatprep.subr.bf16.mxu0 %v749
    %820 = vmatpush1.bf16.msra.mxu0 %v748
    %821 = vmatprep.subr.bf16.mxu0 %v754
    %822 = vmatpush1.bf16.msra.mxu0 %v753
    %823 = vmatprep.subr.bf16.mxu0 %v759
    %824 = vmatpush1.bf16.msra.mxu0 %v758
    %825 = vmatprep.subr.bf16.mxu0 %v764
    %826 = vmatpush1.bf16.msra.mxu0 %v763
    %827 = vmatprep.subr.bf16.mxu0 %v769
    %828 = vmatpush1.bf16.msra.mxu0 %v768
    %829 = vmatprep.subr.bf16.mxu0 0
    %830 = vmatpush1.bf16.msra.mxu0 0
    %831 = vmatprep.subr.bf16.mxu0 0
    %832 = vmatpush1.bf16.msra.mxu0 0
    %833 = vmatprep.subr.bf16.mxu0 0
    %834 = vmatpush1.bf16.msra.mxu0 0
    %835 = vmatprep.subr.bf16.mxu0 0
    %836 = vmatpush1.bf16.msra.mxu0 0
    %837 = vmatprep.subr.bf16.mxu0 0
    %838 = vmatpush1.bf16.msra.mxu0 0
    %839 = vmatprep.subr.bf16.mxu0 0
    %840 = vmatpush1.bf16.msra.mxu0 0
    %841 = vmatprep.subr.bf16.mxu0 0
    %842 = vmatpush1.bf16.msra.mxu0 0
    %843 = vmatprep.subr.bf16.mxu0 0
    %844 = vmatpush1.bf16.msra.mxu0 0
    %845 = vmatprep.mubr.bf16.mxu0 0
    %846 = vmatmul.mubr.bf16.gmra.mrb[0].mxu0 %v529
    %v847 = vpop.f32.mrb[0].mxu0
    %v848 = vadd.f32 %v583, %v847
    %v849 = vpop.f32.mrb[0].mxu0
    %v850 = vadd.f32 %v587, %v849
    %v851 = vpop.f32.mrb[0].mxu0
    %v852 = vpop.f32.mrb[0].mxu0
    %853 = vdwg.mxu0
    %854 = vmatprep.subr.bf16.mxu0 %v736
    %855 = vmatpush1.bf16.msra.mxu0 %v735
    %856 = vmatprep.subr.bf16.mxu0 %v741
    %857 = vmatpush1.bf16.msra.mxu0 %v740
    %858 = vmatprep.subr.bf16.mxu0 %v746
    %859 = vmatpush1.bf16.msra.mxu0 %v745
    %860 = vmatprep.subr.bf16.mxu0 %v751
    %861 = vmatpush1.bf16.msra.mxu0 %v750
    %862 = vmatprep.subr.bf16.mxu0 %v756
    %863 = vmatpush1.bf16.msra.mxu0 %v755
    %864 = vmatprep.subr.bf16.mxu0 %v761
    %865 = vmatpush1.bf16.msra.mxu0 %v760
    %866 = vmatprep.subr.bf16.mxu0 %v766
    %867 = vmatpush1.bf16.msra.mxu0 %v765
    %868 = vmatprep.subr.bf16.mxu0 %v771
    %869 = vmatpush1.bf16.msra.mxu0 %v770
    %870 = vmatprep.subr.bf16.mxu0 0
    %871 = vmatpush1.bf16.msra.mxu0 0
    %872 = vmatprep.subr.bf16.mxu0 0
    %873 = vmatpush1.bf16.msra.mxu0 0
    %874 = vmatprep.subr.bf16.mxu0 0
    %875 = vmatpush1.bf16.msra.mxu0 0
    %876 = vmatprep.subr.bf16.mxu0 0
    %877 = vmatpush1.bf16.msra.mxu0 0
    %878 = vmatprep.subr.bf16.mxu0 0
    %879 = vmatpush1.bf16.msra.mxu0 0
    %880 = vmatprep.subr.bf16.mxu0 0
    %881 = vmatpush1.bf16.msra.mxu0 0
    %882 = vmatprep.subr.bf16.mxu0 0
    %883 = vmatpush1.bf16.msra.mxu0 0
    %884 = vmatprep.subr.bf16.mxu0 0
    %885 = vmatpush1.bf16.msra.mxu0 0
    %886 = vmatprep.mubr.bf16.mxu0 0
    %887 = vmatmul.mubr.bf16.gmra.mrb[0].mxu0 %v529
    %v888 = vpop.f32.mrb[0].mxu0
    %v889 = vadd.f32 %v591, %v888
    %v890 = vpop.f32.mrb[0].mxu0
    %v891 = vadd.f32 %v595, %v890
    %v892 = vpop.f32.mrb[0].mxu0
    %v893 = vpop.f32.mrb[0].mxu0
    %894 = vdwg.mxu0
    %895 = vmatprep.subr.bf16.mxu0 0
    %896 = vmatpush1.bf16.msra.mxu0 %v737
    %897 = vmatprep.subr.bf16.mxu0 0
    %898 = vmatpush1.bf16.msra.mxu0 %v742
    %899 = vmatprep.subr.bf16.mxu0 0
    %900 = vmatpush1.bf16.msra.mxu0 %v747
    %901 = vmatprep.subr.bf16.mxu0 0
    %902 = vmatpush1.bf16.msra.mxu0 %v752
    %903 = vmatprep.subr.bf16.mxu0 0
    %904 = vmatpush1.bf16.msra.mxu0 %v757
    %905 = vmatprep.subr.bf16.mxu0 0
    %906 = vmatpush1.bf16.msra.mxu0 %v762
    %907 = vmatprep.subr.bf16.mxu0 0
    %908 = vmatpush1.bf16.msra.mxu0 %v767
    %909 = vmatprep.subr.bf16.mxu0 0
    %910 = vmatpush1.bf16.msra.mxu0 %v772
    %911 = vmatprep.subr.bf16.mxu0 0
    %912 = vmatpush1.bf16.msra.mxu0 0
    %913 = vmatprep.subr.bf16.mxu0 0
    %914 = vmatpush1.bf16.msra.mxu0 0
    %915 = vmatprep.subr.bf16.mxu0 0
    %916 = vmatpush1.bf16.msra.mxu0 0
    %917 = vmatprep.subr.bf16.mxu0 0
    %918 = vmatpush1.bf16.msra.mxu0 0
    %919 = vmatprep.subr.bf16.mxu0 0
    %920 = vmatpush1.bf16.msra.mxu0 0
    %921 = vmatprep.subr.bf16.mxu0 0
    %922 = vmatpush1.bf16.msra.mxu0 0
    %923 = vmatprep.subr.bf16.mxu0 0
    %924 = vmatpush1.bf16.msra.mxu0 0
    %925 = vmatprep.subr.bf16.mxu0 0
    %926 = vmatpush1.bf16.msra.mxu0 0
    %927 = vmatprep.mubr.bf16.mxu0 0
    %928 = vmatmul.mubr.bf16.gmra.mrb[0].mxu0 %v529
    %v929 = vpop.f32.mrb[0].mxu0
    %v930 = vadd.f32 %v599, %v929
    %v931 = vpop.f32.mrb[0].mxu0
    %v932 = vpop.f32.mrb[0].mxu0
    %v933 = vpop.f32.mrb[0].mxu0
    %934 = vdwg.mxu0
    %v935 = vpack.c.bf16 %v848, %v848
    %v936 = vpack.c.bf16 %v850, %v850
    %v937 = vpack.c.bf16 %v889, %v889
    %v938 = vpack.c.bf16 %v891, %v891
    %v939 = vpack.c.bf16 %v930, %v930
    %v945 = vunpack.c.l.b16 %v935
    %v946 = vunpack.c.l.b16 %v936
    %v947 = vunpack.c.l.b16 %v937
    %v948 = vunpack.c.l.b16 %v938
    %v949 = vunpack.c.l.b16 %v939
    %v950 = vpack.c.b16 %v946, %v945
    %v951 = vpack.c.b16 %v948, %v947
    %v952 = vpack.c.b16 %v949, %v949
    %956 = vst [vmem:[#allocation13] sm:$0xff] %v950
    %957 = vst [vmem:[#allocation13 + $0x8] sm:$0xff] %v951
    %958 = vst [vmem:[#allocation13 + $0x10] sm:$0xf] %v952
    // Predicated region
    $region70: #{tpu_custom_call.1} parent=1 // pred_check
      _
    $region71: #{tpu_custom_call.1} parent=1 // pred_check_branch
      %960 = sbr.rel (0) target = $region73
    $region72: #{tpu_custom_call.1} parent=1 // pred_region
      %s962 = ssub.s32 320, 320
      %963 = vsyncadd [#allocation4], %s962
      %s965 = sshll.u32 [#allocation13], 4
      %s966 = int_to_ptr.vmem [resolvable:$true] %s965
      %968 = dma.vmem_to_hbm [thread:$0]  %s966, 320, %s11, [#allocation4]
    $region73: #{tpu_custom_call.1} parent=1 // pred_fallthru
      _
    // Predicated region
    $region74: #{tpu_custom_call.1} parent=1 // pred_check
      _
    $region75: #{tpu_custom_call.1} parent=1 // pred_check_branch
      %970 = sbr.rel (0) target = $region77
    $region76: #{tpu_custom_call.1} parent=1 // pred_region
      %971 = dma.done [#allocation4], 320
    $region77: #{tpu_custom_call.1} parent=1 // pred_fallthru
      _
    %972 = vsyncpa [#allocation3], 1
    %973 = vsyncpa [#allocation6], 1
    %974 = vsyncpa [#allocation9], 1
    %975 = vsyncpa [#allocation12], 1
    %976 = vsyncpa [#allocation4], 1

</llo_original>
